<compile_context>
chip_gen: v7x
topology: tpu7x:2x2x1
jax: 0.10.0
libtpu: 0.0.40
codegen_flags: <defaults>
</compile_context>

<pallas_src>
import jax
import jax.numpy as jnp
from jax.experimental import pallas as pl
from jax.experimental.pallas import tpu as pltpu


def _hybrid_kernel(ids_ref, x_ref, w2_ref, vw1_ref, b12_ref, q_ref, qb_ref,
                   out_ref, acc_ref):
    t = pl.program_id(1)

    @pl.when(t == 0)
    def _init():
        acc_ref[...] = jnp.zeros_like(acc_ref)

    nb = vw1_ref.shape[0]                       # num sessions (B)
    x = x_ref[...]                              # [tile, H] bf16
    ids = ids_ref[...]                          # [1, tile] int32 (padding = -1)

    # In-kernel one-hot: pure VPU compare, no HBM traffic, exact 0/1 in bf16.
    oh = (jax.lax.broadcasted_iota(jnp.int32, (nb, ids.shape[1]), 0) == ids
          ).astype(jnp.bfloat16)                # [B, tile]

    # v_n_repeat @ W1.T via the one-hot gather (contract the session dim of
    # both operands); padded columns (id = -1) get an all-zero row.
    v_term = jax.lax.dot_general(
        oh, vw1_ref[...],
        dimension_numbers=(((0,), (0,)), ((), ())),
        preferred_element_type=jnp.float32)     # [tile, H] f32

    # W_2(x) + W_1(v_n_rep) + (b1 + b2), f32 accumulation on the MXU.
    h_lin = (jnp.dot(x, w2_ref[...], preferred_element_type=jnp.float32)
             + v_term + b12_ref[...])           # [tile, H] f32
    sig = jax.nn.sigmoid(h_lin)                 # EUP

    # q projection as VPU multiply + lane reduction (keeps the MXU free).
    alpha = jnp.sum(sig * q_ref[...], axis=-1, keepdims=True) + qb_ref[...]   # [tile,1]

    s_g_whole = (alpha * x.astype(jnp.float32)).astype(jnp.bfloat16)          # [tile,H]

    # Segment sum in standard [B,tile] x [tile,H] orientation, f32 accumulator.
    acc_ref[...] += jnp.dot(oh, s_g_whole, preferred_element_type=jnp.float32)

    @pl.when(t == pl.num_programs(1) - 1)
    def _finalize():
        out_ref[...] = acc_ref[...][None]       # per-split partial s_g, f32


def _round_up(v, m):
    return ((v + m - 1) // m) * m


def _choose_tile(n, desired, num_splits):
    tile = max(128, min(_round_up(desired, 128), _round_up(n, 128)))
    n_pad = _round_up(n, tile * num_splits)
    return tile, n_pad


def hybrid_embedding(session_embedding, all_item_embedding, batch, params,
                     num_sessions, tile_n=4096, num_splits=2):
    """Wrapper matching Embedding2HybridEmbedding.forward (all_item_embedding unused)."""
    del all_item_embedding
    x = session_embedding
    n, hdim = x.shape
    b = num_sessions

    # --- tiny plain-JAX glue (B- or scalar-sized, no N-scale passes besides
    #     one bf16 cast + pad of the main operand) -----------------------------
    sections = jnp.bincount(batch, length=b)              # assumes sorted batch
    last_idx = jnp.cumsum(sections) - 1                   # [B] last node / session
    v_n = x[last_idx].astype(jnp.float32)                 # [B, H] gather

    tile, n_pad = _choose_tile(n, tile_n, num_splits)
    pad = n_pad - n

    x_bf = jnp.pad(x.astype(jnp.bfloat16), ((0, pad), (0, 0)))          # [N_pad, H]
    ids = jnp.pad(batch.astype(jnp.int32), (0, pad), constant_values=-1)
    ids = ids.reshape(1, n_pad)                                          # lane-dense

    # --- weight prep (refolded) ---------------------------------------------
    w2 = params["W2"].T.astype(jnp.bfloat16)                             # [H, H]
    vw1 = (v_n @ params["W1"].T.astype(jnp.float32)).astype(jnp.bfloat16)  # [B, H]
    b12 = (params["b1"] + params["b2"]).reshape(1, hdim).astype(jnp.float32)
    q_row = params["q_w"].reshape(1, hdim).astype(jnp.float32)
    qb = params["q_b"].reshape(1, 1).astype(jnp.float32)

    tiles_per_split = n_pad // (tile * num_splits)
    grid = (num_splits, tiles_per_split)

    const = lambda s, t: (0, 0)
    node_blk = lambda s, t: (s * tiles_per_split + t, 0)
    ids_blk = lambda s, t: (0, s * tiles_per_split + t)

    partials = pl.pallas_call(
        _hybrid_kernel,
        out_shape=jax.ShapeDtypeStruct((num_splits, b, hdim), jnp.float32),
        grid_spec=pltpu.PrefetchScalarGridSpec(
            num_scalar_prefetch=0,
            grid=grid,
            in_specs=[
                pl.BlockSpec((1, tile), ids_blk),        # batch ids (i32)
                pl.BlockSpec((tile, hdim), node_blk),    # x (bf16)
                pl.BlockSpec((hdim, hdim), const),       # W2.T (bf16)
                pl.BlockSpec((b, hdim), const),          # v_n @ W1.T (bf16)
                pl.BlockSpec((1, hdim), const),          # b1 + b2 (f32)
                pl.BlockSpec((1, hdim), const),          # q row (f32)
                pl.BlockSpec((1, 1), const),             # q bias (f32)
            ],
            out_specs=pl.BlockSpec((1, b, hdim), lambda s, t: (s, 0, 0)),
            scratch_shapes=[pltpu.VMEM((b, hdim), jnp.float32)],   # s_g partial
        ),
        compiler_params=pltpu.CompilerParams(
            dimension_semantics=("parallel", "arbitrary"),
            vmem_limit_bytes=32 * 1024 * 1024,
        ),
    )(ids, x_bf, w2, vw1, b12, q_row, qb)

    # --- tiny f32 finalize in the wrapper (combine splits + W3) --------------
    s_g = partials.sum(axis=0)                                           # [B, H]
    w3_t = params["W3"].T.astype(jnp.float32)                            # [2H, H]
    out = (v_n @ w3_t[:hdim] + s_g @ w3_t[hdim:]
           + params["b3"].reshape(1, hdim).astype(jnp.float32))
    return out


def _reference(session_embedding, batch, params, num_sessions):
    """Pure-JAX f32 reference mirroring the PyTorch forward."""
    x = session_embedding
    sections = jnp.bincount(batch, length=num_sessions)
    last_idx = jnp.cumsum(sections) - 1
    v_n = x[last_idx]
    v_n_rep = v_n[batch]
    h = (v_n_rep @ params["W1"].T + params["b1"]
         + x @ params["W2"].T + params["b2"])
    alpha = jax.nn.sigmoid(h) @ params["q_w"].T + params["q_b"]
    s_g_whole = alpha * x
    s_g = jax.ops.segment_sum(s_g_whole, batch, num_segments=num_sessions)
    cat = jnp.concatenate([v_n, s_g], axis=1)
    return cat @ params["W3"].T + params["b3"]


def _init_params(key, hidden_size):
    """Deterministic synthetic weights with PyTorch nn.Linear shapes."""
    ks = jax.random.split(key, 8)
    u = lambda k, shape, fan_in: jax.random.uniform(
        k, shape, jnp.float32, -1.0 / jnp.sqrt(fan_in), 1.0 / jnp.sqrt(fan_in))
    H = hidden_size
    return {
        "W1": u(ks[0], (H, H), H), "b1": u(ks[1], (H,), H),
        "W2": u(ks[2], (H, H), H), "b2": u(ks[3], (H,), H),
        "q_w": u(ks[4], (1, H), H), "q_b": u(ks[5], (1,), H),
        "W3": u(ks[6], (H, 2 * H), 2 * H), "b3": u(ks[7], (H,), 2 * H),
    }


if __name__ == "__main__":
    key = jax.random.PRNGKey(0)
    k_param, k_sess, k_items = jax.random.split(key, 3)

    hidden = 32
    num_sessions = 2
    # sorted/contiguous batch vector: session 0 has 3 nodes, session 1 has 5
    batch = jnp.array([0, 0, 0, 1, 1, 1, 1, 1], dtype=jnp.int32)
    n_nodes = batch.shape[0]

    params = _init_params(k_param, hidden)
    session_embedding = jax.random.normal(k_sess, (n_nodes, hidden), jnp.float32)
    all_item_embedding = jax.random.normal(k_items, (10, hidden), jnp.float32)  # unused

    out = hybrid_embedding(session_embedding, all_item_embedding, batch, params,
                           num_sessions)
    out = jax.block_until_ready(out)

    ref = _reference(session_embedding, batch, params, num_sessions)
    assert out.shape == (num_sessions, hidden)
    # bf16 MXU operands with f32 accumulation and an all-f32 finalize.
    assert jnp.allclose(out, ref, atol=3e-2, rtol=3e-2), "mismatch vs reference"

    print("KERNEL_OK")
</pallas_src>

<mosaic_0001>
module attributes {stable_mosaic.version = 11 : i64} {
  func.func @_hybrid_kernel(%arg0: i32, %arg1: i32, %arg2: memref<1x128xi32, #tpu.memory_space<vmem>>, %arg3: memref<128x32xbf16, #tpu.memory_space<vmem>>, %arg4: memref<32x32xbf16, #tpu.memory_space<vmem>>, %arg5: memref<2x32xbf16, #tpu.memory_space<vmem>>, %arg6: memref<1x32xf32, #tpu.memory_space<vmem>>, %arg7: memref<1x32xf32, #tpu.memory_space<vmem>>, %arg8: memref<1x1xf32, #tpu.memory_space<vmem>>, %arg9: memref<1x2x32xf32, #tpu.memory_space<vmem>>, %arg10: memref<2x32xf32, #tpu.memory_space<vmem>>) attributes {dimension_semantics = [#tpu.dimension_semantics<parallel>, #tpu.dimension_semantics<arbitrary>], iteration_bounds = array<i64: 2, 1>, scalar_prefetch = 0 : i64, scratch_operands = 1 : i64, tpu.core_type = #tpu.core_type<tc>, window_params = [{transform_indices = @transform_0, window_bounds = array<i64: 1, 128>}, {transform_indices = @transform_1, window_bounds = array<i64: 128, 32>}, {pipeline_mode = #tpu.pipeline_mode<synchronous>, transform_indices = @transform_2, window_bounds = array<i64: 32, 32>}, {pipeline_mode = #tpu.pipeline_mode<synchronous>, transform_indices = @transform_3, window_bounds = array<i64: 2, 32>}, {pipeline_mode = #tpu.pipeline_mode<synchronous>, transform_indices = @transform_4, window_bounds = array<i64: 1, 32>}, {pipeline_mode = #tpu.pipeline_mode<synchronous>, transform_indices = @transform_5, window_bounds = array<i64: 1, 32>}, {pipeline_mode = #tpu.pipeline_mode<synchronous>, transform_indices = @transform_6, window_bounds = array<i64: 1, 1>}, {transform_indices = @transform_7, window_bounds = array<i64: 1, 2, 32>}]} {
    %c0_i32 = arith.constant 0 : i32
    %0 = arith.cmpi eq, %arg1, %c0_i32 : i32
    %1 = arith.extui %0 : i1 to i32
    %c0_i32_0 = arith.constant 0 : i32
    %2 = arith.cmpi ne, %1, %c0_i32_0 : i32
    scf.if %2 {
      %cst_24 = arith.constant 0.000000e+00 : f32
      %43 = vector.broadcast %cst_24 : f32 to vector<2x32xf32>
      %c0_25 = arith.constant 0 : index
      %c0_26 = arith.constant 0 : index
      %44 = vector.load %arg10[%c0_25, %c0_26] : memref<2x32xf32, #tpu.memory_space<vmem>>, vector<2x32xf32>
      tpu.vector_store %arg10[%c0_25, %c0_26], %43 {strides = array<i32>} : memref<2x32xf32, #tpu.memory_space<vmem>>, vector<2x32xf32>,
    } else {
    }
    %c0 = arith.constant 0 : index
    %c0_1 = arith.constant 0 : index
    %3 = vector.load %arg3[%c0, %c0_1] : memref<128x32xbf16, #tpu.memory_space<vmem>>, vector<128x32xbf16>
    %c0_2 = arith.constant 0 : index
    %c0_3 = arith.constant 0 : index
    %4 = vector.load %arg2[%c0_2, %c0_3] : memref<1x128xi32, #tpu.memory_space<vmem>>, vector<1x128xi32>
    %5 = tpu.iota {dimensions = array<i32: 0>} : vector<2x128xi32>
    %6 = vector.broadcast %4 : vector<1x128xi32> to vector<2x128xi32>
    %7 = arith.cmpi eq, %5, %6 : vector<2x128xi32>
    %8 = arith.extui %7 : vector<2x128xi1> to vector<2x128xi32>
    %9 = arith.sitofp %8 : vector<2x128xi32> to vector<2x128xf32>
    %10 = arith.truncf %9 : vector<2x128xf32> to vector<2x128xbf16>
    %c0_4 = arith.constant 0 : index
    %c0_5 = arith.constant 0 : index
    %11 = vector.load %arg5[%c0_4, %c0_5] : memref<2x32xbf16, #tpu.memory_space<vmem>>, vector<2x32xbf16>
    %cst = arith.constant dense<0.000000e+00> : vector<128x32xf32>
    %12 = tpu.matmul %10, %11, %cst {dimension_numbers = #tpu.dot_dimension_numbers<[0], [0], [1], [1], [0, 1, 1, 1], [], []>} : vector<2x128xbf16>, vector<2x32xbf16>, vector<128x32xf32> -> vector<128x32xf32>
    %c0_6 = arith.constant 0 : index
    %c0_7 = arith.constant 0 : index
    %13 = vector.load %arg4[%c0_6, %c0_7] : memref<32x32xbf16, #tpu.memory_space<vmem>>, vector<32x32xbf16>
    %cst_8 = arith.constant dense<0.000000e+00> : vector<128x32xf32>
    %14 = tpu.matmul %3, %13, %cst_8 {dimension_numbers = #tpu.dot_dimension_numbers<[1], [0], [0], [1], [0, 0, 1, 1], [], []>} : vector<128x32xbf16>, vector<32x32xbf16>, vector<128x32xf32> -> vector<128x32xf32>
    %15 = arith.addf %14, %12 : vector<128x32xf32>
    %c0_9 = arith.constant 0 : index
    %c0_10 = arith.constant 0 : index
    %16 = vector.load %arg6[%c0_9, %c0_10] : memref<1x32xf32, #tpu.memory_space<vmem>>, vector<1x32xf32>
    %17 = vector.broadcast %16 : vector<1x32xf32> to vector<128x32xf32>
    %18 = arith.addf %15, %17 : vector<128x32xf32>
    %19 = arith.negf %18 : vector<128x32xf32>
    %20 = math.exp %19 : vector<128x32xf32>
    %cst_11 = arith.constant 1.000000e+00 : f32
    %21 = vector.broadcast %cst_11 : f32 to vector<128x32xf32>
    %22 = arith.addf %21, %20 : vector<128x32xf32>
    %23 = arith.divf %21, %22 : vector<128x32xf32>
    %c0_12 = arith.constant 0 : index
    %c0_13 = arith.constant 0 : index
    %24 = vector.load %arg7[%c0_12, %c0_13] : memref<1x32xf32, #tpu.memory_space<vmem>>, vector<1x32xf32>
    %25 = vector.broadcast %24 : vector<1x32xf32> to vector<128x32xf32>
    %26 = arith.mulf %23, %25 : vector<128x32xf32>
    %cst_14 = arith.constant dense<0.000000e+00> : vector<128xf32>
    %27 = vector.multi_reduction <add>, %26, %cst_14 [1] : vector<128x32xf32> to vector<128xf32>
    %28 = vector.shape_cast %27 : vector<128xf32> to vector<128x1xf32>
    %c0_15 = arith.constant 0 : index
    %c0_16 = arith.constant 0 : index
    %29 = vector.load %arg8[%c0_15, %c0_16] : memref<1x1xf32, #tpu.memory_space<vmem>>, vector<1x1xf32>
    %30 = vector.broadcast %29 : vector<1x1xf32> to vector<128x1xf32>
    %31 = arith.addf %28, %30 : vector<128x1xf32>
    %32 = arith.extf %3 : vector<128x32xbf16> to vector<128x32xf32>
    %33 = vector.broadcast %31 : vector<128x1xf32> to vector<128x32xf32>
    %34 = arith.mulf %33, %32 : vector<128x32xf32>
    %35 = arith.truncf %34 : vector<128x32xf32> to vector<128x32xbf16>
    %c0_17 = arith.constant 0 : index
    %c0_18 = arith.constant 0 : index
    %36 = vector.load %arg10[%c0_17, %c0_18] : memref<2x32xf32, #tpu.memory_space<vmem>>, vector<2x32xf32>
    %cst_19 = arith.constant dense<0.000000e+00> : vector<2x32xf32>
    %37 = tpu.matmul %10, %35, %cst_19 {dimension_numbers = #tpu.dot_dimension_numbers<[1], [0], [0], [1], [0, 0, 1, 1], [], []>} : vector<2x128xbf16>, vector<128x32xbf16>, vector<2x32xf32> -> vector<2x32xf32>
    %38 = arith.addf %36, %37 : vector<2x32xf32>
    %c0_20 = arith.constant 0 : index
    %c0_21 = arith.constant 0 : index
    %39 = vector.load %arg10[%c0_20, %c0_21] : memref<2x32xf32, #tpu.memory_space<vmem>>, vector<2x32xf32>
    tpu.vector_store %arg10[%c0_20, %c0_21], %38 {strides = array<i32>} : memref<2x32xf32, #tpu.memory_space<vmem>>, vector<2x32xf32>,
    %c0_i32_22 = arith.constant 0 : i32
    %40 = arith.cmpi eq, %arg1, %c0_i32_22 : i32
    %41 = arith.extui %40 : i1 to i32
    %c0_i32_23 = arith.constant 0 : i32
    %42 = arith.cmpi ne, %41, %c0_i32_23 : i32
    scf.if %42 {
      %c0_24 = arith.constant 0 : index
      %c0_25 = arith.constant 0 : index
      %43 = vector.load %arg10[%c0_24, %c0_25] : memref<2x32xf32, #tpu.memory_space<vmem>>, vector<2x32xf32>
      %44 = vector.shape_cast %43 : vector<2x32xf32> to vector<1x2x32xf32>
      %c0_26 = arith.constant 0 : index
      %c0_27 = arith.constant 0 : index
      %c0_28 = arith.constant 0 : index
      %45 = vector.load %arg9[%c0_26, %c0_27, %c0_28] : memref<1x2x32xf32, #tpu.memory_space<vmem>>, vector<1x2x32xf32>
      tpu.vector_store %arg9[%c0_26, %c0_27, %c0_28], %44 {strides = array<i32>} : memref<1x2x32xf32, #tpu.memory_space<vmem>>, vector<1x2x32xf32>,
    } else {
    }
    return
  }
  func.func @transform_0(%arg0: i32, %arg1: i32) -> (i32, i32) {
    %c1_i32 = arith.constant 1 : i32
    %0 = arith.muli %arg0, %c1_i32 : i32
    %1 = arith.addi %0, %arg1 : i32
    %c0_i32 = arith.constant 0 : i32
    %c0_i32_0 = arith.constant 0 : i32
    return %c0_i32, %1 : i32, i32
  }
  func.func @transform_1(%arg0: i32, %arg1: i32) -> (i32, i32) {
    %c1_i32 = arith.constant 1 : i32
    %0 = arith.muli %arg0, %c1_i32 : i32
    %1 = arith.addi %0, %arg1 : i32
    %c0_i32 = arith.constant 0 : i32
    %c0_i32_0 = arith.constant 0 : i32
    return %1, %c0_i32 : i32, i32
  }
  func.func @transform_2(%arg0: i32, %arg1: i32) -> (i32, i32) {
    %c0_i32 = arith.constant 0 : i32
    %c0_i32_0 = arith.constant 0 : i32
    %c0_i32_1 = arith.constant 0 : i32
    return %c0_i32, %c0_i32_0 : i32, i32
  }
  func.func @transform_3(%arg0: i32, %arg1: i32) -> (i32, i32) {
    %c0_i32 = arith.constant 0 : i32
    %c0_i32_0 = arith.constant 0 : i32
    %c0_i32_1 = arith.constant 0 : i32
    return %c0_i32, %c0_i32_0 : i32, i32
  }
  func.func @transform_4(%arg0: i32, %arg1: i32) -> (i32, i32) {
    %c0_i32 = arith.constant 0 : i32
    %c0_i32_0 = arith.constant 0 : i32
    %c0_i32_1 = arith.constant 0 : i32
    return %c0_i32, %c0_i32_0 : i32, i32
  }
  func.func @transform_5(%arg0: i32, %arg1: i32) -> (i32, i32) {
    %c0_i32 = arith.constant 0 : i32
    %c0_i32_0 = arith.constant 0 : i32
    %c0_i32_1 = arith.constant 0 : i32
    return %c0_i32, %c0_i32_0 : i32, i32
  }
  func.func @transform_6(%arg0: i32, %arg1: i32) -> (i32, i32) {
    %c0_i32 = arith.constant 0 : i32
    %c0_i32_0 = arith.constant 0 : i32
    %c0_i32_1 = arith.constant 0 : i32
    return %c0_i32, %c0_i32_0 : i32, i32
  }
  func.func @transform_7(%arg0: i32, %arg1: i32) -> (i32, i32, i32) {
    %c0_i32 = arith.constant 0 : i32
    %c0_i32_0 = arith.constant 0 : i32
    %c0_i32_1 = arith.constant 0 : i32
    return %arg0, %c0_i32, %c0_i32_0 : i32, i32, i32
  }
}

</mosaic_0001>

<llo_original>
// kernel: tpu_custom_call.1
$region0: #{tpu_custom_call.1}
  #allocation0 [shape = 'u32[]', space=smem, size = 0x4, offset = 0x4, fixed_abs, tag = 'smem constant byte address 0x4 - core index']
  #allocation1 [shape = 'u32[144,128]{1,0:T(1,128)}', space=vmem, size = 0x12000, scoped, tag = 'internal scratch']
  #allocation2 [shape = 'f32[2,32]{1,0:T(2,128)}', space=vmem, size = 0x400, scoped, tag = 'scratch operand']
  #allocation3 [shape = 'f32[1,1]{1,0:T(1,128)S(1)}', space=vmem, size = 0x200, scoped, tag = 'scoped memory for tpu_custom_call.1']
  %s0 = inlined_call_operand.vmem [shape: s32[1,256], index: 0, kind: input, shape index: {}]
  %s1 = inlined_call_operand.vmem [shape: bf16[256,32], index: 1, kind: input, shape index: {}]
  %s2 = inlined_call_operand.vmem [shape: bf16[32,32], index: 2, kind: input, shape index: {}]
  %s3 = inlined_call_operand.vmem [shape: bf16[2,32], index: 3, kind: input, shape index: {}]
  %s4 = inlined_call_operand.vmem [shape: f32[1,32], index: 4, kind: input, shape index: {}]
  %s5 = inlined_call_operand.vmem [shape: f32[1,32], index: 5, kind: input, shape index: {}]
  %s6 = inlined_call_operand.<no memory space> [shape: f32[1,1], index: 6, kind: input, shape index: {}]
  %s7 = inlined_call_operand.hbm [shape: f32[2,2,32], index: 7, kind: output, shape index: {}]
  %s8 = sld [smem:[#allocation0]]
  $region69: #{tpu_custom_call.1} parent=0
    _
  %s10 = ssub.s32 1, %s8
  %s11 = scalar_select 0, %s10, %s8
  %v12 = vstv %s6
  %13 = vst [vmem:[#allocation3] sm:$0x1] %v12
  $region1: #{tpu_custom_call.1} parent=0
    #allocation4 [shape = 'u8[2048]{0}', space=vmem, size = 0x800, scoped, tag = 'output window, operand 0']
    #allocation5 [shape = 's32[2]{0}', space=sflag, size = 0x8, scoped, tag = 'scoped memory for tpu_custom_call.1']
    %14 = vsyncpa [#allocation5], 0
    %s15 = scalar_lea.sflag [#allocation5], 1
    %16 = vsyncpa %s15, 0
    loop: start=0, step=1, limit=4
    $region2: #{tpu_custom_call.1} parent=1 // loop_pre_header
      _
    $region3: #{tpu_custom_call.1} parent=1 // loop_header
      %s18 = sphi 0, %s22
      %p19 = scmp.ge.s32.totalorder %s18, 4
      %s25 = sphi 0, %s37
      %s26 = sphi 0, %s33
      %s27 = sphi 0, %s25
      %s28 = sphi 0, %s26
      %s29 = sphi 0, %s27
      %s30 = sphi 0, %s28
      %s42 = sphi 0, %s44
      %s45 = sphi 0, %s42
      %s46 = sphi 0, %s45
      %s62 = sphi 0, %s46
      %s70 = sphi 0, %s72
      %s73 = sphi 0, %s70
      %s74 = sphi 0, %s73
      %s90 = sphi 0, %s74
      %s94 = sphi 0, %s94
      %s96 = sphi 0, %s94
      %s97 = sphi 0, %s96
      %s111 = sphi 0, %s97
      %s115 = sphi 0, %s115
      %s117 = sphi 0, %s115
      %s118 = sphi 0, %s117
      %s132 = sphi 0, %s118
      %s136 = sphi 0, %s136
      %s138 = sphi 0, %s136
      %s139 = sphi 0, %s138
      %s153 = sphi 0, %s139
      %s157 = sphi 0, %s157
      %s159 = sphi 0, %s157
      %s160 = sphi 0, %s159
      %s174 = sphi 0, %s160
      %s178 = sphi 0, %s178
      %s180 = sphi 0, %s178
      %s181 = sphi 0, %s180
      %s195 = sphi 0, %s181
      %s201 = sphi 0, %s203
      %s204 = sphi 0, %s201
      %s205 = sphi 0, %s204
      %s221 = sphi 0, %s205
    $region4: #{tpu_custom_call.1} parent=1 // loop_header_branch
      %21 = sbr.rel (%p19) target = $region8
    $region5: #{tpu_custom_call.1} parent=1 // loop_body
      %s23 = ssub.s32 %s18, 1
      %s24 = ssub.s32 %s18, 2
      %s31 = sadd.s32 1, %s26
      %p32 = scmp.ge.s32.totalorder %s31, 1
      %s33 = scalar_select %p32, 0, %s31
      %s34 = sadd.s32 1, %s25
      %s35 = scalar_select %p32, %s34, %s25
      %p36 = scmp.ge.s32.totalorder %s35, 2
      %s37 = scalar_select %p36, 0, %s35
      %s38 = sadd.s32 %s25, %s26
      %s39 = sadd.s32 %s37, %s33
      %s40 = ssub.s32 %s38, %s39
      %p41 = scmp.eq.s32.totalorder %s40, 0
      %s43 = sadd.s32 %s42, 1
      %s44 = scalar_select %p41, %s42, %s43
      %p47 = pneg %p41
      %p48 = scmp.eq.s32.totalorder %s18, 1
      %p49 = por %p47, %p48
      %p50 = scmp.ne.s32.totalorder %s42, %s45
      %p51 = scmp.eq.s32.totalorder %s18, 0
      %p52 = por %p50, %p51
      %p53 = scmp.ne.s32.totalorder %s42, %s45
      %p54 = scmp.eq.s32.totalorder %s23, 1
      %p55 = por %p53, %p54
      %p56 = scmp.ne.s32.totalorder %s45, %s46
      %p57 = scmp.eq.s32.totalorder %s23, 0
      %p58 = por %p56, %p57
      %p59 = scmp.ne.s32.totalorder %s45, %s46
      %p60 = scmp.eq.s32.totalorder %s24, 1
      %p61 = por %p59, %p60
      %p63 = scmp.ne.s32.totalorder %s46, %s62
      %p64 = scmp.eq.s32.totalorder %s24, 0
      %p65 = por %p63, %p64
      %s66 = sadd.s32 %s25, %s26
      %s67 = sadd.s32 %s37, %s33
      %s68 = ssub.s32 %s66, %s67
      %p69 = scmp.eq.s32.totalorder %s68, 0
      %s71 = sadd.s32 %s70, 1
      %s72 = scalar_select %p69, %s70, %s71
      %p75 = pneg %p69
      %p76 = scmp.eq.s32.totalorder %s18, 1
      %p77 = por %p75, %p76
      %p78 = scmp.ne.s32.totalorder %s70, %s73
      %p79 = scmp.eq.s32.totalorder %s18, 0
      %p80 = por %p78, %p79
      %p81 = scmp.ne.s32.totalorder %s70, %s73
      %p82 = scmp.eq.s32.totalorder %s23, 1
      %p83 = por %p81, %p82
      %p84 = scmp.ne.s32.totalorder %s73, %s74
      %p85 = scmp.eq.s32.totalorder %s23, 0
      %p86 = por %p84, %p85
      %p87 = scmp.ne.s32.totalorder %s73, %s74
      %p88 = scmp.eq.s32.totalorder %s24, 1
      %p89 = por %p87, %p88
      %p91 = scmp.ne.s32.totalorder %s74, %s90
      %p92 = scmp.eq.s32.totalorder %s24, 0
      %p93 = por %p91, %p92
      %s95 = sadd.s32 %s94, 1
      %p98 = scmp.eq.s32.totalorder %s18, 1
      %p99 = scmp.ne.s32.totalorder %s94, %s96
      %p100 = scmp.eq.s32.totalorder %s18, 0
      %p101 = por %p99, %p100
      %p102 = scmp.ne.s32.totalorder %s94, %s96
      %p103 = scmp.eq.s32.totalorder %s23, 1
      %p104 = por %p102, %p103
      %p105 = scmp.ne.s32.totalorder %s96, %s97
      %p106 = scmp.eq.s32.totalorder %s23, 0
      %p107 = por %p105, %p106
      %p108 = scmp.ne.s32.totalorder %s96, %s97
      %p109 = scmp.eq.s32.totalorder %s24, 1
      %p110 = por %p108, %p109
      %p112 = scmp.ne.s32.totalorder %s97, %s111
      %p113 = scmp.eq.s32.totalorder %s24, 0
      %p114 = por %p112, %p113
      %s116 = sadd.s32 %s115, 1
      %p119 = scmp.eq.s32.totalorder %s18, 1
      %p120 = scmp.ne.s32.totalorder %s115, %s117
      %p121 = scmp.eq.s32.totalorder %s18, 0
      %p122 = por %p120, %p121
      %p123 = scmp.ne.s32.totalorder %s115, %s117
      %p124 = scmp.eq.s32.totalorder %s23, 1
      %p125 = por %p123, %p124
      %p126 = scmp.ne.s32.totalorder %s117, %s118
      %p127 = scmp.eq.s32.totalorder %s23, 0
      %p128 = por %p126, %p127
      %p129 = scmp.ne.s32.totalorder %s117, %s118
      %p130 = scmp.eq.s32.totalorder %s24, 1
      %p131 = por %p129, %p130
      %p133 = scmp.ne.s32.totalorder %s118, %s132
      %p134 = scmp.eq.s32.totalorder %s24, 0
      %p135 = por %p133, %p134
      %s137 = sadd.s32 %s136, 1
      %p140 = scmp.eq.s32.totalorder %s18, 1
      %p141 = scmp.ne.s32.totalorder %s136, %s138
      %p142 = scmp.eq.s32.totalorder %s18, 0
      %p143 = por %p141, %p142
      %p144 = scmp.ne.s32.totalorder %s136, %s138
      %p145 = scmp.eq.s32.totalorder %s23, 1
      %p146 = por %p144, %p145
      %p147 = scmp.ne.s32.totalorder %s138, %s139
      %p148 = scmp.eq.s32.totalorder %s23, 0
      %p149 = por %p147, %p148
      %p150 = scmp.ne.s32.totalorder %s138, %s139
      %p151 = scmp.eq.s32.totalorder %s24, 1
      %p152 = por %p150, %p151
      %p154 = scmp.ne.s32.totalorder %s139, %s153
      %p155 = scmp.eq.s32.totalorder %s24, 0
      %p156 = por %p154, %p155
      %s158 = sadd.s32 %s157, 1
      %p161 = scmp.eq.s32.totalorder %s18, 1
      %p162 = scmp.ne.s32.totalorder %s157, %s159
      %p163 = scmp.eq.s32.totalorder %s18, 0
      %p164 = por %p162, %p163
      %p165 = scmp.ne.s32.totalorder %s157, %s159
      %p166 = scmp.eq.s32.totalorder %s23, 1
      %p167 = por %p165, %p166
      %p168 = scmp.ne.s32.totalorder %s159, %s160
      %p169 = scmp.eq.s32.totalorder %s23, 0
      %p170 = por %p168, %p169
      %p171 = scmp.ne.s32.totalorder %s159, %s160
      %p172 = scmp.eq.s32.totalorder %s24, 1
      %p173 = por %p171, %p172
      %p175 = scmp.ne.s32.totalorder %s160, %s174
      %p176 = scmp.eq.s32.totalorder %s24, 0
      %p177 = por %p175, %p176
      %s179 = sadd.s32 %s178, 1
      %p182 = scmp.eq.s32.totalorder %s18, 1
      %p183 = scmp.ne.s32.totalorder %s178, %s180
      %p184 = scmp.eq.s32.totalorder %s18, 0
      %p185 = por %p183, %p184
      %p186 = scmp.ne.s32.totalorder %s178, %s180
      %p187 = scmp.eq.s32.totalorder %s23, 1
      %p188 = por %p186, %p187
      %p189 = scmp.ne.s32.totalorder %s180, %s181
      %p190 = scmp.eq.s32.totalorder %s23, 0
      %p191 = por %p189, %p190
      %p192 = scmp.ne.s32.totalorder %s180, %s181
      %p193 = scmp.eq.s32.totalorder %s24, 1
      %p194 = por %p192, %p193
      %p196 = scmp.ne.s32.totalorder %s181, %s195
      %p197 = scmp.eq.s32.totalorder %s24, 0
      %p198 = por %p196, %p197
      %s199 = ssub.s32 %s25, %s37
      %p200 = scmp.eq.s32.totalorder %s199, 0
      %s202 = sadd.s32 %s201, 1
      %s203 = scalar_select %p200, %s201, %s202
      %p206 = pneg %p200
      %p207 = scmp.eq.s32.totalorder %s18, 1
      %p208 = por %p206, %p207
      %p209 = scmp.ne.s32.totalorder %s201, %s204
      %p210 = scmp.eq.s32.totalorder %s18, 0
      %p211 = por %p209, %p210
      %p212 = scmp.ne.s32.totalorder %s201, %s204
      %p213 = scmp.eq.s32.totalorder %s23, 1
      %p214 = por %p212, %p213
      %p215 = scmp.ne.s32.totalorder %s204, %s205
      %p216 = scmp.eq.s32.totalorder %s23, 0
      %p217 = por %p215, %p216
      %p218 = scmp.ne.s32.totalorder %s204, %s205
      %p219 = scmp.eq.s32.totalorder %s24, 1
      %p220 = por %p218, %p219
      %p222 = scmp.ne.s32.totalorder %s205, %s221
      %p223 = scmp.eq.s32.totalorder %s24, 0
      %p224 = por %p222, %p223
      %p225 = scmp.le.s32.totalorder 1, %s18
      %p226 = scmp.lt.s32.totalorder %s18, 3
      %p227 = pnand %p225, %p226
      %p228 = pneg %p227
      // Predicated region
      $region9: #{tpu_custom_call.1} parent=5 // pred_check
        _
      $region10: #{tpu_custom_call.1} parent=5 // pred_check_branch
        %230 = sbr.rel (%p227) target = $region12
      $region11: #{tpu_custom_call.1} parent=5 // pred_region
        %s231 = ssub.s32 %s18, 1
        // Predicated region
        $region13: #{tpu_custom_call.1} parent=11 // pred_check
          %p232 = pneg %p107
        $region14: #{tpu_custom_call.1} parent=11 // pred_check_branch
          %234 = sbr.rel (%p232) target = $region16
        $region15: #{tpu_custom_call.1} parent=11 // pred_region
          _
        $region16: #{tpu_custom_call.1} parent=11 // pred_fallthru
          _
        // Predicated region
        $region17: #{tpu_custom_call.1} parent=11 // pred_check
          %p235 = pneg %p128
        $region18: #{tpu_custom_call.1} parent=11 // pred_check_branch
          %237 = sbr.rel (%p235) target = $region20
        $region19: #{tpu_custom_call.1} parent=11 // pred_region
          _
        $region20: #{tpu_custom_call.1} parent=11 // pred_fallthru
          _
        // Predicated region
        $region21: #{tpu_custom_call.1} parent=11 // pred_check
          %p238 = pneg %p149
        $region22: #{tpu_custom_call.1} parent=11 // pred_check_branch
          %240 = sbr.rel (%p238) target = $region24
        $region23: #{tpu_custom_call.1} parent=11 // pred_region
          _
        $region24: #{tpu_custom_call.1} parent=11 // pred_fallthru
          _
        // Predicated region
        $region25: #{tpu_custom_call.1} parent=11 // pred_check
          %p241 = pneg %p170
        $region26: #{tpu_custom_call.1} parent=11 // pred_check_branch
          %243 = sbr.rel (%p241) target = $region28
        $region27: #{tpu_custom_call.1} parent=11 // pred_region
          _
        $region28: #{tpu_custom_call.1} parent=11 // pred_fallthru
          _
        // Predicated region
        $region29: #{tpu_custom_call.1} parent=11 // pred_check
          %p244 = pneg %p191
        $region30: #{tpu_custom_call.1} parent=11 // pred_check_branch
          %246 = sbr.rel (%p244) target = $region32
        $region31: #{tpu_custom_call.1} parent=11 // pred_region
          _
        $region32: #{tpu_custom_call.1} parent=11 // pred_fallthru
          _
      $region12: #{tpu_custom_call.1} parent=5 // pred_fallthru
        _
      %p247 = scmp.lt.s32.totalorder %s18, 2
      // Predicated region
      $region33: #{tpu_custom_call.1} parent=5 // pred_check
        %p248 = pneg %p247
      $region34: #{tpu_custom_call.1} parent=5 // pred_check_branch
        %250 = sbr.rel (%p248) target = $region36
      $region35: #{tpu_custom_call.1} parent=5 // pred_region
        // Predicated region
        $region37: #{tpu_custom_call.1} parent=35 // pred_check
          %p251 = pneg %p52
        $region38: #{tpu_custom_call.1} parent=35 // pred_check_branch
          %253 = sbr.rel (%p251) target = $region40
        $region39: #{tpu_custom_call.1} parent=35 // pred_region
          %s254 = sadd.s32 %s25, %s26
          %p255 = scmp.lt.s32.totalorder %s254, 1
          %s256 = scalar_select %p255, %s254, 1
          %s257 = scalar_lea.vmem %s0, %s256
          %s258 = sadd.s32 %s25, %s26
        $region40: #{tpu_custom_call.1} parent=35 // pred_fallthru
          _
        // Predicated region
        $region41: #{tpu_custom_call.1} parent=35 // pred_check
          %p259 = pneg %p80
        $region42: #{tpu_custom_call.1} parent=35 // pred_check_branch
          %261 = sbr.rel (%p259) target = $region44
        $region43: #{tpu_custom_call.1} parent=35 // pred_region
          %s262 = sadd.s32 %s25, %s26
          %s263 = smul.u32 16, %s262
          %p264 = scmp.lt.s32.totalorder %s263, 31
          %s265 = scalar_select %p264, %s263, 31
          %s266 = smul.addr %s265, 4
          %s267 = scalar_lea.vmem %s1, %s266
          %s268 = sadd.s32 %s25, %s26
          %s269 = smul.u32 16, %s268
        $region44: #{tpu_custom_call.1} parent=35 // pred_fallthru
          _
      $region36: #{tpu_custom_call.1} parent=5 // pred_fallthru
        _
      %p270 = scmp.le.s32.totalorder 1, %s18
      %p271 = scmp.lt.s32.totalorder %s18, 3
      %p272 = pnand %p270, %p271
      %p273 = pneg %p272
      // Predicated region
      $region45: #{tpu_custom_call.1} parent=5 // pred_check
        _
      $region46: #{tpu_custom_call.1} parent=5 // pred_check_branch
        %275 = sbr.rel (%p272) target = $region48
      $region47: #{tpu_custom_call.1} parent=5 // pred_region
        %s276 = ssub.s32 %s18, 1
        %s277 = sadd.s32 %s27, %s28
        %p278 = scmp.lt.s32.totalorder %s277, 1
        %s279 = scalar_select %p278, %s277, 1
        %s280 = scalar_lea.vmem %s0, %s279
        %p281 = pneg %p58
        %p282 = pneg %p55
        %s283 = sadd.s32 %s27, %s28
        %s284 = smul.u32 16, %s283
        %p285 = scmp.lt.s32.totalorder %s284, 31
        %s286 = scalar_select %p285, %s284, 31
        %s287 = smul.addr %s286, 4
        %s288 = scalar_lea.vmem %s1, %s287
        %p289 = pneg %p86
        %p290 = pneg %p83
        %p291 = pneg %p107
        %p292 = pneg %p104
        %p293 = pneg %p128
        %p294 = pneg %p125
        %p295 = pneg %p149
        %p296 = pneg %p146
        %p297 = pneg %p170
        %p298 = pneg %p167
        %p299 = pneg %p191
        %p300 = pneg %p188
        %p301 = pneg %p217
        %p302 = pneg %p214
        %s303 = sand.u32 %s204, 1
        %s304 = scalar_lea.sflag [#allocation5], %s303
        %s305 = sand.u32 %s204, 1
        %s306 = smul.addr %s305, 2
        %s307 = scalar_lea.vmem [#allocation4], %s306
        %s308 = sadd.s32 %s27, %s28
        %p309 = scmp.lt.s32.totalorder %s308, 1
        %s310 = scalar_select %p309, %s308, 1
        %s311 = scalar_lea.vmem %s0, %s310
        %s312 = sadd.s32 %s27, %s28
        %s313 = sadd.s32 %s27, %s28
        %s314 = smul.u32 16, %s313
        %p315 = scmp.lt.s32.totalorder %s314, 31
        %s316 = scalar_select %p315, %s314, 31
        %s317 = smul.addr %s316, 4
        %s318 = scalar_lea.vmem %s1, %s317
        %s319 = sadd.s32 %s27, %s28
        %s320 = smul.u32 16, %s319
        %p322 = scmp.eq.s32.totalorder %s28, 0
        // Predicated region
        $region49: #{tpu_custom_call.1} parent=47 // pred_check
          %p323 = pneg %p322
        $region50: #{tpu_custom_call.1} parent=47 // pred_check_branch
          %325 = sbr.rel (%p323) target = $region52
        $region51: #{tpu_custom_call.1} parent=47 // pred_region
          %vm326 = vcmask 254976
          %327 = vst.msk [vmem:[#allocation2] sm:$0x3] %vm326, 0.0
        $region52: #{tpu_custom_call.1} parent=47 // pred_fallthru
          _
        %v328 = vld [vmem:[%s318] sm:$0xf]
        %v329 = vld [vmem:[%s318 + $0x4] sm:$0xf]
        %v330 = vld [vmem:[%s318 + $0x8] sm:$0xf]
        %v331 = vld [vmem:[%s318 + $0xc] sm:$0xf]
        %v332 = vld [vmem:[%s318 + $0x10] sm:$0xf]
        %v333 = vld [vmem:[%s318 + $0x14] sm:$0xf]
        %v334 = vld [vmem:[%s318 + $0x18] sm:$0xf]
        %v335 = vld [vmem:[%s318 + $0x1c] sm:$0xf]
        %v336 = vld [vmem:[%s318 + $0x20] sm:$0xf]
        %v337 = vld [vmem:[%s318 + $0x24] sm:$0xf]
        %v338 = vld [vmem:[%s318 + $0x28] sm:$0xf]
        %v339 = vld [vmem:[%s318 + $0x2c] sm:$0xf]
        %v340 = vld [vmem:[%s318 + $0x30] sm:$0xf]
        %v341 = vld [vmem:[%s318 + $0x34] sm:$0xf]
        %v342 = vld [vmem:[%s318 + $0x38] sm:$0xf]
        %v343 = vld [vmem:[%s318 + $0x3c] sm:$0xf]
        %v344 = vld [vmem:[%s311] sm:$0x1]
        %v345 = vlaneseq
        %v346 = vshrl.u32 %v345, 7
        %v347 = vlaneseq
        %v348 = vshrl.u32 %v347, 7
        %v349 = vsub.s32 0, %v348
        %v350 = vrot.slane %v344, %v349
        %vm351 = vcmp.eq.s32.totalorder %v346, %v350
        %v352 = vsel %vm351, 1, 0
        %v353 = vcvt.s32.f32 %v352
        %v354 = vpack.c.bf16 %v353, %v353
        %v355 = vld [vmem:[%s3] sm:$0x1]
        %356 = vxpose.xlu0.c.b16.start [1/8] %v354, 128
        %357 = vxpose.xlu0.c.b16.cont [2/8] 0, 128
        %358 = vxpose.xlu0.c.b16.cont [3/8] 0, 128
        %359 = vxpose.xlu0.c.b16.cont [4/8] 0, 128
        %360 = vxpose.xlu0.c.b16.cont [5/8] 0, 128
        %361 = vxpose.xlu0.c.b16.cont [6/8] 0, 128
        %362 = vxpose.xlu0.c.b16.cont [7/8] 0, 128
        %363 = vxpose.xlu0.c.b16.end [8/8] 0, 128
        %v364 = vpop.trf.xlu0
        %v365 = vpop.trf.xlu0
        %v366 = vpop.trf.xlu0
        %v367 = vpop.trf.xlu0
        %v368 = vpop.trf.xlu0
        %v369 = vpop.trf.xlu0
        %v370 = vpop.trf.xlu0
        %v371 = vpop.trf.xlu0
        %vm372 = vcmask 15360
        %v374 = vsel %vm372, %v364, 0
        %v377 = vsel %vm372, %v365, 0
        %v380 = vsel %vm372, %v366, 0
        %v383 = vsel %vm372, %v367, 0
        %v386 = vsel %vm372, %v368, 0
        %v389 = vsel %vm372, %v369, 0
        %v392 = vsel %vm372, %v370, 0
        %v395 = vsel %vm372, %v371, 0
        %vm397 = vcmask 1040384
        %v399 = vsel %vm397, %v355, 0
        %401 = vmatprep.subr.bf16.mxu0 0
        %402 = vmatpush1.bf16.msra.mxu0 %v399
        %403 = vmatprep.subr.bf16.mxu0 0
        %404 = vmatpush1.bf16.msra.mxu0 0
        %405 = vmatprep.subr.bf16.mxu0 0
        %406 = vmatpush1.bf16.msra.mxu0 0
        %407 = vmatprep.subr.bf16.mxu0 0
        %408 = vmatpush1.bf16.msra.mxu0 0
        %409 = vmatprep.subr.bf16.mxu0 0
        %410 = vmatpush1.bf16.msra.mxu0 0
        %411 = vmatprep.subr.bf16.mxu0 0
        %412 = vmatpush1.bf16.msra.mxu0 0
        %413 = vmatprep.subr.bf16.mxu0 0
        %414 = vmatpush1.bf16.msra.mxu0 0
        %415 = vmatprep.subr.bf16.mxu0 0
        %416 = vmatpush1.bf16.msra.mxu0 0
        %417 = vmatprep.subr.bf16.mxu0 0
        %418 = vmatpush1.bf16.msra.mxu0 0
        %419 = vmatprep.subr.bf16.mxu0 0
        %420 = vmatpush1.bf16.msra.mxu0 0
        %421 = vmatprep.subr.bf16.mxu0 0
        %422 = vmatpush1.bf16.msra.mxu0 0
        %423 = vmatprep.subr.bf16.mxu0 0
        %424 = vmatpush1.bf16.msra.mxu0 0
        %425 = vmatprep.subr.bf16.mxu0 0
        %426 = vmatpush1.bf16.msra.mxu0 0
        %427 = vmatprep.subr.bf16.mxu0 0
        %428 = vmatpush1.bf16.msra.mxu0 0
        %429 = vmatprep.subr.bf16.mxu0 0
        %430 = vmatpush1.bf16.msra.mxu0 0
        %431 = vmatprep.subr.bf16.mxu0 0
        %432 = vmatpush1.bf16.msra.mxu0 0
        %433 = vmatprep.mubr.bf16.mxu0 0
        %434 = vmatmul.mubr.bf16.gmra.mrb[0].mxu0 %v374
        %v435 = vpop.f32.mrb[0].mxu0
        %v436 = vadd.f32 0.0, %v435
        %v437 = vpop.f32.mrb[0].mxu0
        %v438 = vpop.f32.mrb[0].mxu0
        %v439 = vadd.f32 0.0, %v438
        %v440 = vpop.f32.mrb[0].mxu0
        %441 = vmatprep.mubr.bf16.mxu0 0
        %442 = vmatmul.mubr.bf16.gmra.mrb[0].mxu0 %v377
        %v443 = vpop.f32.mrb[0].mxu0
        %v444 = vadd.f32 0.0, %v443
        %v445 = vpop.f32.mrb[0].mxu0
        %v446 = vpop.f32.mrb[0].mxu0
        %v447 = vadd.f32 0.0, %v446
        %v448 = vpop.f32.mrb[0].mxu0
        %449 = vmatprep.mubr.bf16.mxu0 0
        %450 = vmatmul.mubr.bf16.gmra.mrb[0].mxu0 %v380
        %v451 = vpop.f32.mrb[0].mxu0
        %v452 = vadd.f32 0.0, %v451
        %v453 = vpop.f32.mrb[0].mxu0
        %v454 = vpop.f32.mrb[0].mxu0
        %v455 = vadd.f32 0.0, %v454
        %v456 = vpop.f32.mrb[0].mxu0
        %457 = vmatprep.mubr.bf16.mxu0 0
        %458 = vmatmul.mubr.bf16.gmra.mrb[0].mxu0 %v383
        %v459 = vpop.f32.mrb[0].mxu0
        %v460 = vadd.f32 0.0, %v459
        %v461 = vpop.f32.mrb[0].mxu0
        %v462 = vpop.f32.mrb[0].mxu0
        %v463 = vadd.f32 0.0, %v462
        %v464 = vpop.f32.mrb[0].mxu0
        %465 = vmatprep.mubr.bf16.mxu0 0
        %466 = vmatmul.mubr.bf16.gmra.mrb[0].mxu0 %v386
        %v467 = vpop.f32.mrb[0].mxu0
        %v468 = vadd.f32 0.0, %v467
        %v469 = vpop.f32.mrb[0].mxu0
        %v470 = vpop.f32.mrb[0].mxu0
        %v471 = vadd.f32 0.0, %v470
        %v472 = vpop.f32.mrb[0].mxu0
        %473 = vmatprep.mubr.bf16.mxu0 0
        %474 = vmatmul.mubr.bf16.gmra.mrb[0].mxu0 %v389
        %v475 = vpop.f32.mrb[0].mxu0
        %v476 = vadd.f32 0.0, %v475
        %v477 = vpop.f32.mrb[0].mxu0
        %v478 = vpop.f32.mrb[0].mxu0
        %v479 = vadd.f32 0.0, %v478
        %v480 = vpop.f32.mrb[0].mxu0
        %481 = vmatprep.mubr.bf16.mxu0 0
        %482 = vmatmul.mubr.bf16.gmra.mrb[0].mxu0 %v392
        %v483 = vpop.f32.mrb[0].mxu0
        %v484 = vadd.f32 0.0, %v483
        %v485 = vpop.f32.mrb[0].mxu0
        %v486 = vpop.f32.mrb[0].mxu0
        %v487 = vadd.f32 0.0, %v486
        %v488 = vpop.f32.mrb[0].mxu0
        %489 = vmatprep.mubr.bf16.mxu0 0
        %490 = vmatmul.mubr.bf16.gmra.mrb[0].mxu0 %v395
        %v491 = vpop.f32.mrb[0].mxu0
        %v492 = vadd.f32 0.0, %v491
        %v493 = vpop.f32.mrb[0].mxu0
        %v494 = vpop.f32.mrb[0].mxu0
        %v495 = vadd.f32 0.0, %v494
        %v496 = vpop.f32.mrb[0].mxu0
        %497 = vdwg.mxu0
        %v498 = vld [vmem:[%s2] sm:$0xf]
        %v499 = vld [vmem:[%s2 + $0x4] sm:$0xf]
        %v500 = vld [vmem:[%s2 + $0x8] sm:$0xf]
        %v501 = vld [vmem:[%s2 + $0xc] sm:$0xf]
        %v518 = vunpack.c.l.b16 %v328
        %v519 = vunpack.c.l.b16 %v329
        %v520 = vunpack.c.l.b16 %v330
        %v521 = vunpack.c.l.b16 %v331
        %v522 = vunpack.c.l.b16 %v332
        %v523 = vunpack.c.l.b16 %v333
        %v524 = vunpack.c.l.b16 %v334
        %v525 = vunpack.c.l.b16 %v335
        %v526 = vunpack.c.l.b16 %v336
        %v527 = vunpack.c.l.b16 %v337
        %v528 = vunpack.c.l.b16 %v338
        %v529 = vunpack.c.l.b16 %v339
        %v530 = vunpack.c.l.b16 %v340
        %v531 = vunpack.c.l.b16 %v341
        %v532 = vunpack.c.l.b16 %v342
        %v533 = vunpack.c.l.b16 %v343
        %v534 = vpack.c.b16 %v519, %v518
        %v535 = vpack.c.b16 %v521, %v520
        %v536 = vpack.c.b16 %v523, %v522
        %v537 = vpack.c.b16 %v525, %v524
        %v538 = vpack.c.b16 %v527, %v526
        %v539 = vpack.c.b16 %v529, %v528
        %v540 = vpack.c.b16 %v531, %v530
        %v541 = vpack.c.b16 %v533, %v532
        %v546 = vunpack.c.l.b16 %v498
        %v547 = vunpack.c.l.b16 %v499
        %v548 = vunpack.c.l.b16 %v500
        %v549 = vunpack.c.l.b16 %v501
        %v550 = vpack.c.b16 %v547, %v546
        %v551 = vpack.c.b16 %v549, %v548
        %vm554 = vcmask 261120
        %v556 = vsel %vm554, %v534, 0
        %v559 = vsel %vm554, %v535, 0
        %v562 = vsel %vm554, %v536, 0
        %v565 = vsel %vm554, %v537, 0
        %v568 = vsel %vm554, %v538, 0
        %v571 = vsel %vm554, %v539, 0
        %v574 = vsel %vm554, %v540, 0
        %v577 = vsel %vm554, %v541, 0
        %579 = vmatprep.subr.bf16.mxu0 0
        %580 = vmatpush1.bf16.msra.mxu0 %v550
        %581 = vmatprep.subr.bf16.mxu0 0
        %582 = vmatpush1.bf16.msra.mxu0 %v551
        %583 = vmatprep.subr.bf16.mxu0 0
        %584 = vmatpush1.bf16.msra.mxu0 0
        %585 = vmatprep.subr.bf16.mxu0 0
        %586 = vmatpush1.bf16.msra.mxu0 0
        %587 = vmatprep.subr.bf16.mxu0 0
        %588 = vmatpush1.bf16.msra.mxu0 0
        %589 = vmatprep.subr.bf16.mxu0 0
        %590 = vmatpush1.bf16.msra.mxu0 0
        %591 = vmatprep.subr.bf16.mxu0 0
        %592 = vmatpush1.bf16.msra.mxu0 0
        %593 = vmatprep.subr.bf16.mxu0 0
        %594 = vmatpush1.bf16.msra.mxu0 0
        %595 = vmatprep.subr.bf16.mxu0 0
        %596 = vmatpush1.bf16.msra.mxu0 0
        %597 = vmatprep.subr.bf16.mxu0 0
        %598 = vmatpush1.bf16.msra.mxu0 0
        %599 = vmatprep.subr.bf16.mxu0 0
        %600 = vmatpush1.bf16.msra.mxu0 0
        %601 = vmatprep.subr.bf16.mxu0 0
        %602 = vmatpush1.bf16.msra.mxu0 0
        %603 = vmatprep.subr.bf16.mxu0 0
        %604 = vmatpush1.bf16.msra.mxu0 0
        %605 = vmatprep.subr.bf16.mxu0 0
        %606 = vmatpush1.bf16.msra.mxu0 0
        %607 = vmatprep.subr.bf16.mxu0 0
        %608 = vmatpush1.bf16.msra.mxu0 0
        %609 = vmatprep.subr.bf16.mxu0 0
        %610 = vmatpush1.bf16.msra.mxu0 0
        %611 = vmatprep.mubr.bf16.mxu0 0
        %612 = vmatmul.mubr.bf16.gmra.mrb[0].mxu0 %v556
        %v613 = vpop.f32.mrb[0].mxu0
        %v614 = vadd.f32 %v436, %v613
        %v615 = vpop.f32.mrb[0].mxu0
        %v616 = vpop.f32.mrb[0].mxu0
        %v617 = vadd.f32 %v439, %v616
        %v618 = vpop.f32.mrb[0].mxu0
        %619 = vmatprep.mubr.bf16.mxu0 0
        %620 = vmatmul.mubr.bf16.gmra.mrb[0].mxu0 %v559
        %v621 = vpop.f32.mrb[0].mxu0
        %v622 = vadd.f32 %v444, %v621
        %v623 = vpop.f32.mrb[0].mxu0
        %v624 = vpop.f32.mrb[0].mxu0
        %v625 = vadd.f32 %v447, %v624
        %v626 = vpop.f32.mrb[0].mxu0
        %627 = vmatprep.mubr.bf16.mxu0 0
        %628 = vmatmul.mubr.bf16.gmra.mrb[0].mxu0 %v562
        %v629 = vpop.f32.mrb[0].mxu0
        %v630 = vadd.f32 %v452, %v629
        %v631 = vpop.f32.mrb[0].mxu0
        %v632 = vpop.f32.mrb[0].mxu0
        %v633 = vadd.f32 %v455, %v632
        %v634 = vpop.f32.mrb[0].mxu0
        %635 = vmatprep.mubr.bf16.mxu0 0
        %636 = vmatmul.mubr.bf16.gmra.mrb[0].mxu0 %v565
        %v637 = vpop.f32.mrb[0].mxu0
        %v638 = vadd.f32 %v460, %v637
        %v639 = vpop.f32.mrb[0].mxu0
        %v640 = vpop.f32.mrb[0].mxu0
        %v641 = vadd.f32 %v463, %v640
        %v642 = vpop.f32.mrb[0].mxu0
        %643 = vmatprep.mubr.bf16.mxu0 0
        %644 = vmatmul.mubr.bf16.gmra.mrb[0].mxu0 %v568
        %v645 = vpop.f32.mrb[0].mxu0
        %v646 = vadd.f32 %v468, %v645
        %v647 = vpop.f32.mrb[0].mxu0
        %v648 = vpop.f32.mrb[0].mxu0
        %v649 = vadd.f32 %v471, %v648
        %v650 = vpop.f32.mrb[0].mxu0
        %651 = vmatprep.mubr.bf16.mxu0 0
        %652 = vmatmul.mubr.bf16.gmra.mrb[0].mxu0 %v571
        %v653 = vpop.f32.mrb[0].mxu0
        %v654 = vadd.f32 %v476, %v653
        %v655 = vpop.f32.mrb[0].mxu0
        %v656 = vpop.f32.mrb[0].mxu0
        %v657 = vadd.f32 %v479, %v656
        %v658 = vpop.f32.mrb[0].mxu0
        %659 = vmatprep.mubr.bf16.mxu0 0
        %660 = vmatmul.mubr.bf16.gmra.mrb[0].mxu0 %v574
        %v661 = vpop.f32.mrb[0].mxu0
        %v662 = vadd.f32 %v484, %v661
        %v663 = vpop.f32.mrb[0].mxu0
        %v664 = vpop.f32.mrb[0].mxu0
        %v665 = vadd.f32 %v487, %v664
        %v666 = vpop.f32.mrb[0].mxu0
        %667 = vmatprep.mubr.bf16.mxu0 0
        %668 = vmatmul.mubr.bf16.gmra.mrb[0].mxu0 %v577
        %v669 = vpop.f32.mrb[0].mxu0
        %v670 = vadd.f32 %v492, %v669
        %v671 = vpop.f32.mrb[0].mxu0
        %v672 = vpop.f32.mrb[0].mxu0
        %v673 = vadd.f32 %v495, %v672
        %v674 = vpop.f32.mrb[0].mxu0
        %675 = vdwg.mxu0
        %v676 = vld [vmem:[%s4] sm:$0x1]
        %v678 = vlaneseq
        %v679 = vshrl.u32 %v678, 7
        %v680 = vsub.s32 0, %v679
        %v681 = vrot.slane %v676, %v680
        %v683 = vadd.f32 %v614, %v681
        %v684 = vadd.f32 %v617, %v681
        %v685 = vadd.f32 %v622, %v681
        %v686 = vadd.f32 %v625, %v681
        %v687 = vadd.f32 %v630, %v681
        %v688 = vadd.f32 %v633, %v681
        %v689 = vadd.f32 %v638, %v681
        %v690 = vadd.f32 %v641, %v681
        %v691 = vadd.f32 %v646, %v681
        %v692 = vadd.f32 %v649, %v681
        %v693 = vadd.f32 %v654, %v681
        %v694 = vadd.f32 %v657, %v681
        %v695 = vadd.f32 %v662, %v681
        %v696 = vadd.f32 %v665, %v681
        %v697 = vadd.f32 %v670, %v681
        %v698 = vadd.f32 %v673, %v681
        %v699 = vxor.u32 %v683, 2147483648
        %v700 = vxor.u32 %v684, 2147483648
        %v701 = vxor.u32 %v685, 2147483648
        %v702 = vxor.u32 %v686, 2147483648
        %v703 = vxor.u32 %v687, 2147483648
        %v704 = vxor.u32 %v688, 2147483648
        %v705 = vxor.u32 %v689, 2147483648
        %v706 = vxor.u32 %v690, 2147483648
        %v707 = vxor.u32 %v691, 2147483648
        %v708 = vxor.u32 %v692, 2147483648
        %v709 = vxor.u32 %v693, 2147483648
        %v710 = vxor.u32 %v694, 2147483648
        %v711 = vxor.u32 %v695, 2147483648
        %v712 = vxor.u32 %v696, 2147483648
        %v713 = vxor.u32 %v697, 2147483648
        %v714 = vxor.u32 %v698, 2147483648
        %v715 = vmul.f32 %v699, 1.442695
        %v716 = vpow.pop %v715
        %v717 = vmul.f32 %v700, 1.442695
        %v718 = vpow.pop %v717
        %v719 = vmul.f32 %v701, 1.442695
        %v720 = vpow.pop %v719
        %v721 = vmul.f32 %v702, 1.442695
        %v722 = vpow.pop %v721
        %v723 = vmul.f32 %v703, 1.442695
        %v724 = vpow.pop %v723
        %v725 = vmul.f32 %v704, 1.442695
        %v726 = vpow.pop %v725
        %v727 = vmul.f32 %v705, 1.442695
        %v728 = vpow.pop %v727
        %v729 = vmul.f32 %v706, 1.442695
        %v730 = vpow.pop %v729
        %v731 = vmul.f32 %v707, 1.442695
        %v732 = vpow.pop %v731
        %v733 = vmul.f32 %v708, 1.442695
        %v734 = vpow.pop %v733
        %v735 = vmul.f32 %v709, 1.442695
        %v736 = vpow.pop %v735
        %v737 = vmul.f32 %v710, 1.442695
        %v738 = vpow.pop %v737
        %v739 = vmul.f32 %v711, 1.442695
        %v740 = vpow.pop %v739
        %v741 = vmul.f32 %v712, 1.442695
        %v742 = vpow.pop %v741
        %v743 = vmul.f32 %v713, 1.442695
        %v744 = vpow.pop %v743
        %v745 = vmul.f32 %v714, 1.442695
        %v746 = vpow.pop %v745
        %v747 = vadd.f32 %v716, 1.0
        %v748 = vadd.f32 %v718, 1.0
        %v749 = vadd.f32 %v720, 1.0
        %v750 = vadd.f32 %v722, 1.0
        %v751 = vadd.f32 %v724, 1.0
        %v752 = vadd.f32 %v726, 1.0
        %v753 = vadd.f32 %v728, 1.0
        %v754 = vadd.f32 %v730, 1.0
        %v755 = vadd.f32 %v732, 1.0
        %v756 = vadd.f32 %v734, 1.0
        %v757 = vadd.f32 %v736, 1.0
        %v758 = vadd.f32 %v738, 1.0
        %v759 = vadd.f32 %v740, 1.0
        %v760 = vadd.f32 %v742, 1.0
        %v761 = vadd.f32 %v744, 1.0
        %v762 = vadd.f32 %v746, 1.0
        %v763 = vrcp.pop %v747
        %v764 = vmul.f32 1.0, %v763
        %v765 = vrcp.pop %v748
        %v766 = vmul.f32 1.0, %v765
        %v767 = vrcp.pop %v749
        %v768 = vmul.f32 1.0, %v767
        %v769 = vrcp.pop %v750
        %v770 = vmul.f32 1.0, %v769
        %v771 = vrcp.pop %v751
        %v772 = vmul.f32 1.0, %v771
        %v773 = vrcp.pop %v752
        %v774 = vmul.f32 1.0, %v773
        %v775 = vrcp.pop %v753
        %v776 = vmul.f32 1.0, %v775
        %v777 = vrcp.pop %v754
        %v778 = vmul.f32 1.0, %v777
        %v779 = vrcp.pop %v755
        %v780 = vmul.f32 1.0, %v779
        %v781 = vrcp.pop %v756
        %v782 = vmul.f32 1.0, %v781
        %v783 = vrcp.pop %v757
        %v784 = vmul.f32 1.0, %v783
        %v785 = vrcp.pop %v758
        %v786 = vmul.f32 1.0, %v785
        %v787 = vrcp.pop %v759
        %v788 = vmul.f32 1.0, %v787
        %v789 = vrcp.pop %v760
        %v790 = vmul.f32 1.0, %v789
        %v791 = vrcp.pop %v761
        %v792 = vmul.f32 1.0, %v791
        %v793 = vrcp.pop %v762
        %v794 = vmul.f32 1.0, %v793
        %v795 = vld [vmem:[%s5] sm:$0x1]
        %v797 = vlaneseq
        %v798 = vshrl.u32 %v797, 7
        %v799 = vsub.s32 0, %v798
        %v800 = vrot.slane %v795, %v799
        %v802 = vmul.f32 %v764, %v800
        %v803 = vmul.f32 %v766, %v800
        %v804 = vmul.f32 %v768, %v800
        %v805 = vmul.f32 %v770, %v800
        %v806 = vmul.f32 %v772, %v800
        %v807 = vmul.f32 %v774, %v800
        %v808 = vmul.f32 %v776, %v800
        %v809 = vmul.f32 %v778, %v800
        %v810 = vmul.f32 %v780, %v800
        %v811 = vmul.f32 %v782, %v800
        %v812 = vmul.f32 %v784, %v800
        %v813 = vmul.f32 %v786, %v800
        %v814 = vmul.f32 %v788, %v800
        %v815 = vmul.f32 %v790, %v800
        %v816 = vmul.f32 %v792, %v800
        %v817 = vmul.f32 %v794, %v800
        %v818 = vsel %vm554, %v802, 0.0
        %819 = vadd.xlane.f32.xlu0 %v818
        %v820 = vpop.xlane.xlu0 %819
        %v821 = vsel %vm554, %v803, 0.0
        %822 = vadd.xlane.f32.xlu0 %v821
        %v823 = vpop.xlane.xlu0 %822
        %v824 = vsel %vm554, %v804, 0.0
        %825 = vadd.xlane.f32.xlu0 %v824
        %v826 = vpop.xlane.xlu0 %825
        %v827 = vsel %vm554, %v805, 0.0
        %828 = vadd.xlane.f32.xlu0 %v827
        %v829 = vpop.xlane.xlu0 %828
        %v830 = vsel %vm554, %v806, 0.0
        %831 = vadd.xlane.f32.xlu0 %v830
        %v832 = vpop.xlane.xlu0 %831
        %v833 = vsel %vm554, %v807, 0.0
        %834 = vadd.xlane.f32.xlu0 %v833
        %v835 = vpop.xlane.xlu0 %834
        %v836 = vsel %vm554, %v808, 0.0
        %837 = vadd.xlane.f32.xlu0 %v836
        %v838 = vpop.xlane.xlu0 %837
        %v839 = vsel %vm554, %v809, 0.0
        %840 = vadd.xlane.f32.xlu0 %v839
        %v841 = vpop.xlane.xlu0 %840
        %v842 = vsel %vm554, %v810, 0.0
        %843 = vadd.xlane.f32.xlu0 %v842
        %v844 = vpop.xlane.xlu0 %843
        %v845 = vsel %vm554, %v811, 0.0
        %846 = vadd.xlane.f32.xlu0 %v845
        %v847 = vpop.xlane.xlu0 %846
        %v848 = vsel %vm554, %v812, 0.0
        %849 = vadd.xlane.f32.xlu0 %v848
        %v850 = vpop.xlane.xlu0 %849
        %v851 = vsel %vm554, %v813, 0.0
        %852 = vadd.xlane.f32.xlu0 %v851
        %v853 = vpop.xlane.xlu0 %852
        %v854 = vsel %vm554, %v814, 0.0
        %855 = vadd.xlane.f32.xlu0 %v854
        %v856 = vpop.xlane.xlu0 %855
        %v857 = vsel %vm554, %v815, 0.0
        %858 = vadd.xlane.f32.xlu0 %v857
        %v859 = vpop.xlane.xlu0 %858
        %v860 = vsel %vm554, %v816, 0.0
        %861 = vadd.xlane.f32.xlu0 %v860
        %v862 = vpop.xlane.xlu0 %861
        %v863 = vsel %vm554, %v817, 0.0
        %864 = vadd.xlane.f32.xlu0 %v863
        %v865 = vpop.xlane.xlu0 %864
        %v866 = vld [vmem:[#allocation3] sm:$0x1]
        %v868 = vlaneseq
        %v869 = vshrl.u32 %v868, 7
        %v870 = vsub.s32 0, %v869
        %v871 = vrot.slane %v866, %v870
        %v873 = vadd.f32 %v820, %v871
        %v874 = vadd.f32 %v823, %v871
        %v875 = vadd.f32 %v826, %v871
        %v876 = vadd.f32 %v829, %v871
        %v877 = vadd.f32 %v832, %v871
        %v878 = vadd.f32 %v835, %v871
        %v879 = vadd.f32 %v838, %v871
        %v880 = vadd.f32 %v841, %v871
        %v881 = vadd.f32 %v844, %v871
        %v882 = vadd.f32 %v847, %v871
        %v883 = vadd.f32 %v850, %v871
        %v884 = vadd.f32 %v853, %v871
        %v885 = vadd.f32 %v856, %v871
        %v886 = vadd.f32 %v859, %v871
        %v887 = vadd.f32 %v862, %v871
        %v888 = vadd.f32 %v865, %v871
        %v889 = vunpack.c.l.bf16 %v328
        %v890 = vunpack.c.l.bf16 %v329
        %v891 = vunpack.c.l.bf16 %v330
        %v892 = vunpack.c.l.bf16 %v331
        %v893 = vunpack.c.l.bf16 %v332
        %v894 = vunpack.c.l.bf16 %v333
        %v895 = vunpack.c.l.bf16 %v334
        %v896 = vunpack.c.l.bf16 %v335
        %v897 = vunpack.c.l.bf16 %v336
        %v898 = vunpack.c.l.bf16 %v337
        %v899 = vunpack.c.l.bf16 %v338
        %v900 = vunpack.c.l.bf16 %v339
        %v901 = vunpack.c.l.bf16 %v340
        %v902 = vunpack.c.l.bf16 %v341
        %v903 = vunpack.c.l.bf16 %v342
        %v904 = vunpack.c.l.bf16 %v343
        %906 = vset.pattern.permute.xlu0 0
        %907 = vperm.xlu0 %906, %v873
        %v908 = vpop.permute.xlu0 %907
        %911 = vset.pattern.permute.xlu0 0
        %912 = vperm.xlu0 %911, %v874
        %v913 = vpop.permute.xlu0 %912
        %916 = vset.pattern.permute.xlu0 0
        %917 = vperm.xlu0 %916, %v875
        %v918 = vpop.permute.xlu0 %917
        %921 = vset.pattern.permute.xlu0 0
        %922 = vperm.xlu0 %921, %v876
        %v923 = vpop.permute.xlu0 %922
        %926 = vset.pattern.permute.xlu0 0
        %927 = vperm.xlu0 %926, %v877
        %v928 = vpop.permute.xlu0 %927
        %931 = vset.pattern.permute.xlu0 0
        %932 = vperm.xlu0 %931, %v878
        %v933 = vpop.permute.xlu0 %932
        %936 = vset.pattern.permute.xlu0 0
        %937 = vperm.xlu0 %936, %v879
        %v938 = vpop.permute.xlu0 %937
        %941 = vset.pattern.permute.xlu0 0
        %942 = vperm.xlu0 %941, %v880
        %v943 = vpop.permute.xlu0 %942
        %946 = vset.pattern.permute.xlu0 0
        %947 = vperm.xlu0 %946, %v881
        %v948 = vpop.permute.xlu0 %947
        %951 = vset.pattern.permute.xlu0 0
        %952 = vperm.xlu0 %951, %v882
        %v953 = vpop.permute.xlu0 %952
        %956 = vset.pattern.permute.xlu0 0
        %957 = vperm.xlu0 %956, %v883
        %v958 = vpop.permute.xlu0 %957
        %961 = vset.pattern.permute.xlu0 0
        %962 = vperm.xlu0 %961, %v884
        %v963 = vpop.permute.xlu0 %962
        %966 = vset.pattern.permute.xlu0 0
        %967 = vperm.xlu0 %966, %v885
        %v968 = vpop.permute.xlu0 %967
        %971 = vset.pattern.permute.xlu0 0
        %972 = vperm.xlu0 %971, %v886
        %v973 = vpop.permute.xlu0 %972
        %976 = vset.pattern.permute.xlu0 0
        %977 = vperm.xlu0 %976, %v887
        %v978 = vpop.permute.xlu0 %977
        %981 = vset.pattern.permute.xlu0 0
        %982 = vperm.xlu0 %981, %v888
        %v983 = vpop.permute.xlu0 %982
        %v985 = vmul.f32 %v908, %v889
        %v986 = vmul.f32 %v913, %v890
        %v987 = vmul.f32 %v918, %v891
        %v988 = vmul.f32 %v923, %v892
        %v989 = vmul.f32 %v928, %v893
        %v990 = vmul.f32 %v933, %v894
        %v991 = vmul.f32 %v938, %v895
        %v992 = vmul.f32 %v943, %v896
        %v993 = vmul.f32 %v948, %v897
        %v994 = vmul.f32 %v953, %v898
        %v995 = vmul.f32 %v958, %v899
        %v996 = vmul.f32 %v963, %v900
        %v997 = vmul.f32 %v968, %v901
        %v998 = vmul.f32 %v973, %v902
        %v999 = vmul.f32 %v978, %v903
        %v1000 = vmul.f32 %v983, %v904
        %v1001 = vpack.c.bf16 %v986, %v985
        %v1002 = vpack.c.bf16 %v988, %v987
        %v1003 = vpack.c.bf16 %v990, %v989
        %v1004 = vpack.c.bf16 %v992, %v991
        %v1005 = vpack.c.bf16 %v994, %v993
        %v1006 = vpack.c.bf16 %v996, %v995
        %v1007 = vpack.c.bf16 %v998, %v997
        %v1008 = vpack.c.bf16 %v1000, %v999
        %v1009 = vld [vmem:[#allocation2] sm:$0x3]
        %1010 = vmatprep.subr.bf16.mxu0 0
        %1011 = vmatpush1.bf16.msra.mxu0 %v1001
        %1012 = vmatprep.subr.bf16.mxu0 0
        %1013 = vmatpush1.bf16.msra.mxu0 %v1002
        %1014 = vmatprep.subr.bf16.mxu0 0
        %1015 = vmatpush1.bf16.msra.mxu0 %v1003
        %1016 = vmatprep.subr.bf16.mxu0 0
        %1017 = vmatpush1.bf16.msra.mxu0 %v1004
        %1018 = vmatprep.subr.bf16.mxu0 0
        %1019 = vmatpush1.bf16.msra.mxu0 %v1005
        %1020 = vmatprep.subr.bf16.mxu0 0
        %1021 = vmatpush1.bf16.msra.mxu0 %v1006
        %1022 = vmatprep.subr.bf16.mxu0 0
        %1023 = vmatpush1.bf16.msra.mxu0 %v1007
        %1024 = vmatprep.subr.bf16.mxu0 0
        %1025 = vmatpush1.bf16.msra.mxu0 %v1008
        %1026 = vmatprep.subr.bf16.mxu0 0
        %1027 = vmatpush1.bf16.msra.mxu0 0
        %1028 = vmatprep.subr.bf16.mxu0 0
        %1029 = vmatpush1.bf16.msra.mxu0 0
        %1030 = vmatprep.subr.bf16.mxu0 0
        %1031 = vmatpush1.bf16.msra.mxu0 0
        %1032 = vmatprep.subr.bf16.mxu0 0
        %1033 = vmatpush1.bf16.msra.mxu0 0
        %1034 = vmatprep.subr.bf16.mxu0 0
        %1035 = vmatpush1.bf16.msra.mxu0 0
        %1036 = vmatprep.subr.bf16.mxu0 0
        %1037 = vmatpush1.bf16.msra.mxu0 0
        %1038 = vmatprep.subr.bf16.mxu0 0
        %1039 = vmatpush1.bf16.msra.mxu0 0
        %1040 = vmatprep.subr.bf16.mxu0 0
        %1041 = vmatpush1.bf16.msra.mxu0 0
        %1042 = vmatprep.mubr.bf16.mxu0 0
        %1043 = vmatmul.mubr.bf16.gmra.mrb[0].mxu0 %v354
        %v1044 = vpop.f32.mrb[0].mxu0
        %v1045 = vadd.f32 0.0, %v1044
        %v1046 = vpop.f32.mrb[0].mxu0
        %v1047 = vpop.f32.mrb[0].mxu0
        %v1048 = vpop.f32.mrb[0].mxu0
        %1049 = vdwg.mxu0
        %v1050 = vadd.f32 %v1009, %v1045
        %vm1051 = vcmask 254976
        %1052 = vst.msk [vmem:[#allocation2] sm:$0x3] %vm1051, %v1050
        // Predicated region
        $region53: #{tpu_custom_call.1} parent=47 // pred_check
          %p1053 = pneg %p322
        $region54: #{tpu_custom_call.1} parent=47 // pred_check_branch
          %1055 = sbr.rel (%p1053) target = $region56
        $region55: #{tpu_custom_call.1} parent=47 // pred_region
          %v1056 = vld [vmem:[#allocation2] sm:$0x3]
          %1057 = vst.msk [vmem:[%s307] sm:$0x3] %vm1051, %v1056
        $region56: #{tpu_custom_call.1} parent=47 // pred_fallthru
          _
        %s1058 = sand.u32 %s204, 1
        %s1059 = scalar_lea.sflag [#allocation5], %s1058
        %s1060 = sand.u32 %s204, 1
        %s1061 = smul.addr %s1060, 2
        %s1062 = scalar_lea.vmem [#allocation4], %s1061
        // Predicated region
        $region57: #{tpu_custom_call.1} parent=47 // pred_check
          %p1063 = pneg %p214
        $region58: #{tpu_custom_call.1} parent=47 // pred_check_branch
          %1065 = sbr.rel (%p1063) target = $region60
        $region59: #{tpu_custom_call.1} parent=47 // pred_region
          %s1067 = ssub.s32 32, 32
          %1068 = vsyncadd %s1059, %s1067
          %s1069 = smul.addr %s27, 32
          %s1070 = scalar_lea.hbm %s7, %s1069
          %s1072 = sshll.u32 %s1062, 4
          %s1073 = int_to_ptr.vmem [resolvable:$true] %s1072
          %1075 = dma.vmem_to_hbm [thread:$0]  %s1073, 32, %s1070, %s1059
        $region60: #{tpu_custom_call.1} parent=47 // pred_fallthru
          _
      $region48: #{tpu_custom_call.1} parent=5 // pred_fallthru
        _
      %p1076 = scmp.le.s32.totalorder 2, %s18
      // Predicated region
      $region61: #{tpu_custom_call.1} parent=5 // pred_check
        %p1077 = pneg %p1076
      $region62: #{tpu_custom_call.1} parent=5 // pred_check_branch
        %1079 = sbr.rel (%p1077) target = $region64
      $region63: #{tpu_custom_call.1} parent=5 // pred_region
        %s1080 = ssub.s32 %s18, 2
        // Predicated region
        $region65: #{tpu_custom_call.1} parent=63 // pred_check
          %p1081 = pneg %p220
        $region66: #{tpu_custom_call.1} parent=63 // pred_check_branch
          %1083 = sbr.rel (%p1081) target = $region68
        $region67: #{tpu_custom_call.1} parent=63 // pred_region
          %s1084 = sand.u32 %s205, 1
          %s1085 = scalar_lea.sflag [#allocation5], %s1084
          %s1086 = sand.u32 %s205, 1
          %s1087 = smul.addr %s1086, 2
          %s1088 = scalar_lea.vmem [#allocation4], %s1087
          %1089 = dma.done %s1085, 32
        $region68: #{tpu_custom_call.1} parent=63 // pred_fallthru
          _
      $region64: #{tpu_custom_call.1} parent=5 // pred_fallthru
        _
    $region6: #{tpu_custom_call.1} parent=1 // loop_footer
      %s22 = sadd.s32 1, %s18
    $region7: #{tpu_custom_call.1} parent=1 // loop_footer_branch
      %17 = sbr.rel target = $region3
    $region8: #{tpu_custom_call.1} parent=1 // loop_exit
      _
    %1090 = vsyncpa [#allocation5], 1
    %s1091 = scalar_lea.sflag [#allocation5], 1
    %1092 = vsyncpa %s1091, 1

</llo_original>
